<compile_context>
chip_gen: v5e
topology: v5e:2x2
jax: 0.10.0
libtpu: 0.0.40
codegen_flags: <defaults>
</compile_context>

<pallas_src>
import jax
import jax.numpy as jnp
from jax.experimental import pallas as pl
from jax.experimental.pallas import tpu as pltpu

_LANE = 128
# 1024*128*4B = 512 KiB per f32 input block per pipeline buffer; with (M+1)
# double-buffered inputs this stays comfortably inside the 32 MiB default
# scoped VMEM on v5e/v6e and v7x (64 MiB physical).
_TILE_S_MAX = 1024
_EPS = 1e-8


def _make_stage_stats_kernel(n_stages):
    """Kernel over grid (batch, reduction_tile).

    refs = (sr_0, ..., sr_{M-1}, hr, abs_out, sq_out)
      sr_m : (1, TILE_S, 128) tile of prediction m (native dtype)
      hr   : (1, TILE_S, 128) tile of the target, loaded once per step and
             reused against all M prediction tiles
      abs_out / sq_out : (M, 1, 8, 128) f32 resident accumulator blocks
    """

    def kernel(*refs):
        sr_refs = refs[:n_stages]
        hr_ref = refs[n_stages]
        abs_ref = refs[n_stages + 1]
        sq_ref = refs[n_stages + 2]

        @pl.when(pl.program_id(1) == 0)
        def _():
            abs_ref[...] = jnp.zeros_like(abs_ref)
            sq_ref[...] = jnp.zeros_like(sq_ref)

        hr = hr_ref[0].astype(jnp.float32)            # (TILE_S, 128)
        tile_s, lane = hr.shape
        for m, sr_ref in enumerate(sr_refs):          # static unroll, small M
            diff = sr_ref[0].astype(jnp.float32) - hr
            # Fold sublane groups on the VPU into one (8, 128) vreg slab; the
            # layout-preserving reshape is free (last two dims stay (8, 128)).
            d3 = diff.reshape(tile_s // 8, 8, lane)
            abs_ref[m, 0] += jnp.abs(d3).sum(axis=0)
            sq_ref[m, 0] += (d3 * d3).sum(axis=0)

    return kernel


def _pick_tile(s, tile_s_max):
    """Return (tile_s, s_padded): tile_s a multiple of 8, preferring no padding."""
    tile_s_max = max(8, (tile_s_max // 8) * 8)
    if s <= tile_s_max:
        tile_s = ((s + 7) // 8) * 8
        return tile_s, tile_s
    # Prefer a multiple-of-8 divisor of s (avoids a full pad copy of the inputs).
    t = tile_s_max
    while t >= 64:
        if s % t == 0:
            return t, s
        t -= 8
    # Fall back: pad the reduction axis up to a multiple of tile_s_max.
    return tile_s_max, ((s + tile_s_max - 1) // tile_s_max) * tile_s_max


def _to_tiles(x, s_pad):
    """(N, C, H, W) -> (N, s_pad, 128), zero padded on the flat axis."""
    n = x.shape[0]
    flat = 1
    for d in x.shape[1:]:
        flat *= d
    x = x.reshape(n, flat)
    pad = s_pad * _LANE - flat
    if pad:
        x = jnp.pad(x, ((0, 0), (0, pad)))
    return x.reshape(n, s_pad, _LANE)


def _stage_stats(sr_list, hr, tile_s_max=_TILE_S_MAX):
    """Fused Pallas pass. Returns (sum_abs, sum_sq), each (M, N) float32:
         sum_abs[m, n] = sum_{chw} |sr_m[n] - hr[n]|
         sum_sq [m, n] = sum_{chw} (sr_m[n] - hr[n])^2
    """
    n_stages = len(sr_list)
    n, c, h, w = hr.shape
    flat = c * h * w
    s = -(-flat // _LANE)                      # 128-lane rows per sample
    tile_s, s_pad = _pick_tile(s, tile_s_max)
    k_steps = s_pad // tile_s

    hr_t = _to_tiles(hr, s_pad)
    sr_t = [_to_tiles(x, s_pad) for x in sr_list]

    data_spec = pl.BlockSpec((1, tile_s, _LANE), lambda i, k: (i, k, 0))
    acc_spec = pl.BlockSpec((n_stages, 1, 8, _LANE), lambda i, k: (0, i, 0, 0))
    acc_shape = jax.ShapeDtypeStruct((n_stages, n, 8, _LANE), jnp.float32)

    abs_out, sq_out = pl.pallas_call(
        _make_stage_stats_kernel(n_stages),
        grid=(n, k_steps),
        in_specs=[data_spec] * (n_stages + 1),
        out_specs=(acc_spec, acc_spec),
        out_shape=(acc_shape, acc_shape),
        compiler_params=pltpu.CompilerParams(
            dimension_semantics=("parallel", "arbitrary")),
    )(*sr_t, hr_t)

    return abs_out.sum(axis=(2, 3)), sq_out.sum(axis=(2, 3))


def ape_v2_loss(predict, hr, loss_weight=1.0, tile_s_max=_TILE_S_MAX):
    """Matches ApeV2Loss(loss_weight=1.0, reduction='mean').forward(predict, hr)."""
    sr_list = list(predict["img"])
    ics_list = list(predict["ics"])
    n_stages = len(sr_list)
    n, c, h, w = hr.shape
    flat = c * h * w

    # Hot path: per-(stage, sample) sum|diff| and sum diff^2 in one Pallas pass.
    sum_abs, sum_sq = _stage_stats(sr_list, hr, tile_s_max=tile_s_max)

    l1 = sum_abs.sum(axis=1) / (n * flat)                     # (M,)  mean |sr_m - hr|
    mse = sum_sq / flat                                       # (M, N) per-sample MSE
    psnr = 10.0 * jnp.log10(1.0 / mse + _EPS)                 # (M, N)

    # TODO(synk): rfft2 + complex magnitude has no Pallas TPU equivalent; keep in XLA.
    hr_f = jnp.fft.rfft2(hr)
    freq = jnp.stack(
        [jnp.mean(jnp.abs(jnp.fft.rfft2(sr_i) - hr_f)) for sr_i in sr_list])  # (M,)

    # FreqLoss(sr_m, hr) = w * (freq*0.01 + w * L1), with w = loss_weight.
    diff_losses = loss_weight * (freq * 0.01 + loss_weight * l1)              # (M,)

    loss = diff_losses[0]
    pre_psnr = psnr[0]
    for m, ic_i in zip(range(1, n_stages), ics_list):
        now_psnr = psnr[m]
        ic_gt = 1.0 - jnp.tanh(now_psnr - pre_psnr)
        pre_psnr = now_psnr
        ic_mse = jnp.mean((jnp.squeeze(ic_i, -1) - ic_gt) ** 2)
        loss = loss + diff_losses[m] + ic_mse
    return loss


def _ape_v2_loss_ref(predict, hr, loss_weight=1.0):
    """Pure-JAX reference mirroring the PyTorch module, for validation."""
    sr_list = list(predict["img"])
    ics_list = list(predict["ics"])

    def l1(p, t):
        return jnp.mean(jnp.abs(p - t))

    def freq_loss(p, t):
        d = jnp.fft.rfft2(p) - jnp.fft.rfft2(t)
        return loss_weight * (jnp.mean(jnp.abs(d)) * 0.01 + loss_weight * l1(p, t))

    def psnr(p, t):
        mse = jnp.mean((p - t) ** 2, axis=(1, 2, 3))
        return 10.0 * jnp.log10(1.0 / mse + _EPS)

    loss = freq_loss(sr_list[0], hr)
    pre = psnr(sr_list[0], hr)
    for sr_i, ic_i in zip(sr_list[1:], ics_list):
        now = psnr(sr_i, hr)
        gt = 1.0 - jnp.tanh(now - pre)
        pre = now
        loss = loss + freq_loss(sr_i, hr) + jnp.mean((jnp.squeeze(ic_i, -1) - gt) ** 2)
    return loss


if __name__ == "__main__":
    key = jax.random.PRNGKey(0)
    ks = jax.random.split(key, 8)

    # Small shapes consistent with the module: batch=2, channels=3, spatial=32,
    # 3 refinement stages (sr list of 3, ics list of 2 per-sample scalars).
    n, c, hgt, wid = 2, 3, 32, 32
    n_stages = 3
    hr = jax.random.uniform(ks[0], (n, c, hgt, wid), dtype=jnp.float32)
    sr_list = [jax.random.uniform(ks[1 + m], (n, c, hgt, wid), dtype=jnp.float32)
               for m in range(n_stages)]
    ics_list = [jax.random.uniform(ks[4 + m], (n, 1), dtype=jnp.float32)
                for m in range(n_stages - 1)]
    predict = {"img": sr_list, "ics": ics_list}

    out = jax.block_until_ready(ape_v2_loss(predict, hr))
    ref = jax.block_until_ready(_ape_v2_loss_ref(predict, hr))
    assert jnp.allclose(out, ref, rtol=1e-5, atol=1e-5), (out, ref)

    # Exercise the multi-tile reduction path (k_steps > 1) with a tiny tile.
    out_tiled = jax.block_until_ready(ape_v2_loss(predict, hr, tile_s_max=8))
    assert jnp.allclose(out_tiled, ref, rtol=1e-5, atol=1e-5), (out_tiled, ref)

    # Exercise the ragged path (flat dim not a multiple of 8*128 -> zero pad).
    hr2 = jax.random.uniform(ks[6], (2, 3, 16, 20), dtype=jnp.float32)
    pred2 = {"img": [jax.random.uniform(ks[7], (2, 3, 16, 20), dtype=jnp.float32)],
             "ics": []}
    out2 = jax.block_until_ready(ape_v2_loss(pred2, hr2))
    ref2 = jax.block_until_ready(_ape_v2_loss_ref(pred2, hr2))
    assert jnp.allclose(out2, ref2, rtol=1e-5, atol=1e-5), (out2, ref2)

    print("KERNEL_OK")
</pallas_src>

<mosaic_0001>
module attributes {stable_mosaic.version = 11 : i64} {
  func.func @kernel(%arg0: i32, %arg1: i32, %arg2: memref<1x24x128xf32, #tpu.memory_space<vmem>>, %arg3: memref<1x24x128xf32, #tpu.memory_space<vmem>>, %arg4: memref<1x24x128xf32, #tpu.memory_space<vmem>>, %arg5: memref<1x24x128xf32, #tpu.memory_space<vmem>>, %arg6: memref<3x1x8x128xf32, #tpu.memory_space<vmem>>, %arg7: memref<3x1x8x128xf32, #tpu.memory_space<vmem>>) attributes {dimension_semantics = [#tpu.dimension_semantics<parallel>, #tpu.dimension_semantics<arbitrary>], iteration_bounds = array<i64: 2, 1>, scalar_prefetch = 0 : i64, scratch_operands = 0 : i64, tpu.core_type = #tpu.core_type<tc>, window_params = [{transform_indices = @transform_0, window_bounds = array<i64: 1, 24, 128>}, {transform_indices = @transform_1, window_bounds = array<i64: 1, 24, 128>}, {transform_indices = @transform_2, window_bounds = array<i64: 1, 24, 128>}, {transform_indices = @transform_3, window_bounds = array<i64: 1, 24, 128>}, {transform_indices = @transform_4, window_bounds = array<i64: 3, 1, 8, 128>}, {transform_indices = @transform_5, window_bounds = array<i64: 3, 1, 8, 128>}]} {
    %c0_i32 = arith.constant 0 : i32
    %0 = arith.cmpi eq, %arg1, %c0_i32 : i32
    %1 = arith.extui %0 : i1 to i32
    %c0_i32_0 = arith.constant 0 : i32
    %2 = arith.cmpi ne, %1, %c0_i32_0 : i32
    scf.if %2 {
      %cst_63 = arith.constant 0.000000e+00 : f32
      %65 = vector.broadcast %cst_63 : f32 to vector<3x1x8x128xf32>
      %c0_64 = arith.constant 0 : index
      %c0_65 = arith.constant 0 : index
      %c0_66 = arith.constant 0 : index
      %c0_67 = arith.constant 0 : index
      %66 = vector.load %arg6[%c0_64, %c0_65, %c0_66, %c0_67] : memref<3x1x8x128xf32, #tpu.memory_space<vmem>>, vector<3x1x8x128xf32>
      tpu.vector_store %arg6[%c0_64, %c0_65, %c0_66, %c0_67], %65 {strides = array<i32>} : memref<3x1x8x128xf32, #tpu.memory_space<vmem>>, vector<3x1x8x128xf32>,
      %cst_68 = arith.constant 0.000000e+00 : f32
      %67 = vector.broadcast %cst_68 : f32 to vector<3x1x8x128xf32>
      %c0_69 = arith.constant 0 : index
      %c0_70 = arith.constant 0 : index
      %c0_71 = arith.constant 0 : index
      %c0_72 = arith.constant 0 : index
      %68 = vector.load %arg7[%c0_69, %c0_70, %c0_71, %c0_72] : memref<3x1x8x128xf32, #tpu.memory_space<vmem>>, vector<3x1x8x128xf32>
      tpu.vector_store %arg7[%c0_69, %c0_70, %c0_71, %c0_72], %67 {strides = array<i32>} : memref<3x1x8x128xf32, #tpu.memory_space<vmem>>, vector<3x1x8x128xf32>,
    } else {
    }
    %c0 = arith.constant 0 : index
    %c0_1 = arith.constant 0 : index
    %c0_2 = arith.constant 0 : index
    %3 = vector.load %arg5[%c0, %c0_1, %c0_2] : memref<1x24x128xf32, #tpu.memory_space<vmem>>, vector<1x24x128xf32>
    %4 = vector.shape_cast %3 : vector<1x24x128xf32> to vector<24x128xf32>
    %c0_3 = arith.constant 0 : index
    %c0_4 = arith.constant 0 : index
    %c0_5 = arith.constant 0 : index
    %5 = vector.load %arg2[%c0_3, %c0_4, %c0_5] : memref<1x24x128xf32, #tpu.memory_space<vmem>>, vector<1x24x128xf32>
    %6 = vector.shape_cast %5 : vector<1x24x128xf32> to vector<24x128xf32>
    %7 = arith.subf %6, %4 : vector<24x128xf32>
    %8 = vector.shape_cast %7 : vector<24x128xf32> to vector<3x8x128xf32>
    %c0_6 = arith.constant 0 : index
    %c0_7 = arith.constant 0 : index
    %c0_8 = arith.constant 0 : index
    %c0_9 = arith.constant 0 : index
    %9 = vector.load %arg6[%c0_6, %c0_7, %c0_8, %c0_9] : memref<3x1x8x128xf32, #tpu.memory_space<vmem>>, vector<1x1x8x128xf32>
    %10 = vector.shape_cast %9 : vector<1x1x8x128xf32> to vector<8x128xf32>
    %11 = math.absf %8 : vector<3x8x128xf32>
    %cst = arith.constant dense<0.000000e+00> : vector<8x128xf32>
    %12 = vector.multi_reduction <add>, %11, %cst [0] : vector<3x8x128xf32> to vector<8x128xf32>
    %13 = arith.addf %10, %12 : vector<8x128xf32>
    %c0_10 = arith.constant 0 : index
    %c0_11 = arith.constant 0 : index
    %c0_12 = arith.constant 0 : index
    %c0_13 = arith.constant 0 : index
    %14 = vector.load %arg6[%c0_10, %c0_11, %c0_12, %c0_13] : memref<3x1x8x128xf32, #tpu.memory_space<vmem>>, vector<1x1x8x128xf32>
    %15 = vector.shape_cast %14 : vector<1x1x8x128xf32> to vector<8x128xf32>
    %16 = vector.shape_cast %13 : vector<8x128xf32> to vector<1x1x8x128xf32>
    tpu.vector_store %arg6[%c0_10, %c0_11, %c0_12, %c0_13], %16 {strides = array<i32>} : memref<3x1x8x128xf32, #tpu.memory_space<vmem>>, vector<1x1x8x128xf32>,
    %c0_14 = arith.constant 0 : index
    %c0_15 = arith.constant 0 : index
    %c0_16 = arith.constant 0 : index
    %c0_17 = arith.constant 0 : index
    %17 = vector.load %arg7[%c0_14, %c0_15, %c0_16, %c0_17] : memref<3x1x8x128xf32, #tpu.memory_space<vmem>>, vector<1x1x8x128xf32>
    %18 = vector.shape_cast %17 : vector<1x1x8x128xf32> to vector<8x128xf32>
    %19 = arith.mulf %8, %8 : vector<3x8x128xf32>
    %cst_18 = arith.constant dense<0.000000e+00> : vector<8x128xf32>
    %20 = vector.multi_reduction <add>, %19, %cst_18 [0] : vector<3x8x128xf32> to vector<8x128xf32>
    %21 = arith.addf %18, %20 : vector<8x128xf32>
    %c0_19 = arith.constant 0 : index
    %c0_20 = arith.constant 0 : index
    %c0_21 = arith.constant 0 : index
    %c0_22 = arith.constant 0 : index
    %22 = vector.load %arg7[%c0_19, %c0_20, %c0_21, %c0_22] : memref<3x1x8x128xf32, #tpu.memory_space<vmem>>, vector<1x1x8x128xf32>
    %23 = vector.shape_cast %22 : vector<1x1x8x128xf32> to vector<8x128xf32>
    %24 = vector.shape_cast %21 : vector<8x128xf32> to vector<1x1x8x128xf32>
    tpu.vector_store %arg7[%c0_19, %c0_20, %c0_21, %c0_22], %24 {strides = array<i32>} : memref<3x1x8x128xf32, #tpu.memory_space<vmem>>, vector<1x1x8x128xf32>,
    %c0_23 = arith.constant 0 : index
    %c0_24 = arith.constant 0 : index
    %c0_25 = arith.constant 0 : index
    %25 = vector.load %arg3[%c0_23, %c0_24, %c0_25] : memref<1x24x128xf32, #tpu.memory_space<vmem>>, vector<1x24x128xf32>
    %26 = vector.shape_cast %25 : vector<1x24x128xf32> to vector<24x128xf32>
    %27 = arith.subf %26, %4 : vector<24x128xf32>
    %28 = vector.shape_cast %27 : vector<24x128xf32> to vector<3x8x128xf32>
    %c1 = arith.constant 1 : index
    %c0_26 = arith.constant 0 : index
    %c0_27 = arith.constant 0 : index
    %c0_28 = arith.constant 0 : index
    %29 = vector.load %arg6[%c1, %c0_26, %c0_27, %c0_28] : memref<3x1x8x128xf32, #tpu.memory_space<vmem>>, vector<1x1x8x128xf32>
    %30 = vector.shape_cast %29 : vector<1x1x8x128xf32> to vector<8x128xf32>
    %31 = math.absf %28 : vector<3x8x128xf32>
    %cst_29 = arith.constant dense<0.000000e+00> : vector<8x128xf32>
    %32 = vector.multi_reduction <add>, %31, %cst_29 [0] : vector<3x8x128xf32> to vector<8x128xf32>
    %33 = arith.addf %30, %32 : vector<8x128xf32>
    %c1_30 = arith.constant 1 : index
    %c0_31 = arith.constant 0 : index
    %c0_32 = arith.constant 0 : index
    %c0_33 = arith.constant 0 : index
    %34 = vector.load %arg6[%c1_30, %c0_31, %c0_32, %c0_33] : memref<3x1x8x128xf32, #tpu.memory_space<vmem>>, vector<1x1x8x128xf32>
    %35 = vector.shape_cast %34 : vector<1x1x8x128xf32> to vector<8x128xf32>
    %36 = vector.shape_cast %33 : vector<8x128xf32> to vector<1x1x8x128xf32>
    tpu.vector_store %arg6[%c1_30, %c0_31, %c0_32, %c0_33], %36 {strides = array<i32>} : memref<3x1x8x128xf32, #tpu.memory_space<vmem>>, vector<1x1x8x128xf32>,
    %c1_34 = arith.constant 1 : index
    %c0_35 = arith.constant 0 : index
    %c0_36 = arith.constant 0 : index
    %c0_37 = arith.constant 0 : index
    %37 = vector.load %arg7[%c1_34, %c0_35, %c0_36, %c0_37] : memref<3x1x8x128xf32, #tpu.memory_space<vmem>>, vector<1x1x8x128xf32>
    %38 = vector.shape_cast %37 : vector<1x1x8x128xf32> to vector<8x128xf32>
    %39 = arith.mulf %28, %28 : vector<3x8x128xf32>
    %cst_38 = arith.constant dense<0.000000e+00> : vector<8x128xf32>
    %40 = vector.multi_reduction <add>, %39, %cst_38 [0] : vector<3x8x128xf32> to vector<8x128xf32>
    %41 = arith.addf %38, %40 : vector<8x128xf32>
    %c1_39 = arith.constant 1 : index
    %c0_40 = arith.constant 0 : index
    %c0_41 = arith.constant 0 : index
    %c0_42 = arith.constant 0 : index
    %42 = vector.load %arg7[%c1_39, %c0_40, %c0_41, %c0_42] : memref<3x1x8x128xf32, #tpu.memory_space<vmem>>, vector<1x1x8x128xf32>
    %43 = vector.shape_cast %42 : vector<1x1x8x128xf32> to vector<8x128xf32>
    %44 = vector.shape_cast %41 : vector<8x128xf32> to vector<1x1x8x128xf32>
    tpu.vector_store %arg7[%c1_39, %c0_40, %c0_41, %c0_42], %44 {strides = array<i32>} : memref<3x1x8x128xf32, #tpu.memory_space<vmem>>, vector<1x1x8x128xf32>,
    %c0_43 = arith.constant 0 : index
    %c0_44 = arith.constant 0 : index
    %c0_45 = arith.constant 0 : index
    %45 = vector.load %arg4[%c0_43, %c0_44, %c0_45] : memref<1x24x128xf32, #tpu.memory_space<vmem>>, vector<1x24x128xf32>
    %46 = vector.shape_cast %45 : vector<1x24x128xf32> to vector<24x128xf32>
    %47 = arith.subf %46, %4 : vector<24x128xf32>
    %48 = vector.shape_cast %47 : vector<24x128xf32> to vector<3x8x128xf32>
    %c2 = arith.constant 2 : index
    %c0_46 = arith.constant 0 : index
    %c0_47 = arith.constant 0 : index
    %c0_48 = arith.constant 0 : index
    %49 = vector.load %arg6[%c2, %c0_46, %c0_47, %c0_48] : memref<3x1x8x128xf32, #tpu.memory_space<vmem>>, vector<1x1x8x128xf32>
    %50 = vector.shape_cast %49 : vector<1x1x8x128xf32> to vector<8x128xf32>
    %51 = math.absf %48 : vector<3x8x128xf32>
    %cst_49 = arith.constant dense<0.000000e+00> : vector<8x128xf32>
    %52 = vector.multi_reduction <add>, %51, %cst_49 [0] : vector<3x8x128xf32> to vector<8x128xf32>
    %53 = arith.addf %50, %52 : vector<8x128xf32>
    %c2_50 = arith.constant 2 : index
    %c0_51 = arith.constant 0 : index
    %c0_52 = arith.constant 0 : index
    %c0_53 = arith.constant 0 : index
    %54 = vector.load %arg6[%c2_50, %c0_51, %c0_52, %c0_53] : memref<3x1x8x128xf32, #tpu.memory_space<vmem>>, vector<1x1x8x128xf32>
    %55 = vector.shape_cast %54 : vector<1x1x8x128xf32> to vector<8x128xf32>
    %56 = vector.shape_cast %53 : vector<8x128xf32> to vector<1x1x8x128xf32>
    tpu.vector_store %arg6[%c2_50, %c0_51, %c0_52, %c0_53], %56 {strides = array<i32>} : memref<3x1x8x128xf32, #tpu.memory_space<vmem>>, vector<1x1x8x128xf32>,
    %c2_54 = arith.constant 2 : index
    %c0_55 = arith.constant 0 : index
    %c0_56 = arith.constant 0 : index
    %c0_57 = arith.constant 0 : index
    %57 = vector.load %arg7[%c2_54, %c0_55, %c0_56, %c0_57] : memref<3x1x8x128xf32, #tpu.memory_space<vmem>>, vector<1x1x8x128xf32>
    %58 = vector.shape_cast %57 : vector<1x1x8x128xf32> to vector<8x128xf32>
    %59 = arith.mulf %48, %48 : vector<3x8x128xf32>
    %cst_58 = arith.constant dense<0.000000e+00> : vector<8x128xf32>
    %60 = vector.multi_reduction <add>, %59, %cst_58 [0] : vector<3x8x128xf32> to vector<8x128xf32>
    %61 = arith.addf %58, %60 : vector<8x128xf32>
    %c2_59 = arith.constant 2 : index
    %c0_60 = arith.constant 0 : index
    %c0_61 = arith.constant 0 : index
    %c0_62 = arith.constant 0 : index
    %62 = vector.load %arg7[%c2_59, %c0_60, %c0_61, %c0_62] : memref<3x1x8x128xf32, #tpu.memory_space<vmem>>, vector<1x1x8x128xf32>
    %63 = vector.shape_cast %62 : vector<1x1x8x128xf32> to vector<8x128xf32>
    %64 = vector.shape_cast %61 : vector<8x128xf32> to vector<1x1x8x128xf32>
    tpu.vector_store %arg7[%c2_59, %c0_60, %c0_61, %c0_62], %64 {strides = array<i32>} : memref<3x1x8x128xf32, #tpu.memory_space<vmem>>, vector<1x1x8x128xf32>,
    return
  }
  func.func @transform_0(%arg0: i32, %arg1: i32) -> (i32, i32, i32) {
    %c0_i32 = arith.constant 0 : i32
    %c0_i32_0 = arith.constant 0 : i32
    return %arg0, %arg1, %c0_i32 : i32, i32, i32
  }
  func.func @transform_1(%arg0: i32, %arg1: i32) -> (i32, i32, i32) {
    %c0_i32 = arith.constant 0 : i32
    %c0_i32_0 = arith.constant 0 : i32
    return %arg0, %arg1, %c0_i32 : i32, i32, i32
  }
  func.func @transform_2(%arg0: i32, %arg1: i32) -> (i32, i32, i32) {
    %c0_i32 = arith.constant 0 : i32
    %c0_i32_0 = arith.constant 0 : i32
    return %arg0, %arg1, %c0_i32 : i32, i32, i32
  }
  func.func @transform_3(%arg0: i32, %arg1: i32) -> (i32, i32, i32) {
    %c0_i32 = arith.constant 0 : i32
    %c0_i32_0 = arith.constant 0 : i32
    return %arg0, %arg1, %c0_i32 : i32, i32, i32
  }
  func.func @transform_4(%arg0: i32, %arg1: i32) -> (i32, i32, i32, i32) {
    %c0_i32 = arith.constant 0 : i32
    %c0_i32_0 = arith.constant 0 : i32
    %c0_i32_1 = arith.constant 0 : i32
    %c0_i32_2 = arith.constant 0 : i32
    return %c0_i32, %arg0, %c0_i32_0, %c0_i32_1 : i32, i32, i32, i32
  }
  func.func @transform_5(%arg0: i32, %arg1: i32) -> (i32, i32, i32, i32) {
    %c0_i32 = arith.constant 0 : i32
    %c0_i32_0 = arith.constant 0 : i32
    %c0_i32_1 = arith.constant 0 : i32
    %c0_i32_2 = arith.constant 0 : i32
    return %c0_i32, %arg0, %c0_i32_0, %c0_i32_1 : i32, i32, i32, i32
  }
}

</mosaic_0001>

<llo_original>
// kernel: tpu_custom_call.1
$region0: #{tpu_custom_call.1}
  #allocation0 [shape = 'u32[]', space=smem, size = 0x4, offset = 0x4, fixed_abs, tag = 'smem constant byte address 0x4 - core index']
  #allocation1 [shape = 'u32[72,128]{1,0:T(1,128)}', space=vmem, size = 0x9000, scoped, tag = 'internal scratch']
  %s0 = inlined_call_operand.hbm [shape: f32[2,24,128], index: 0, kind: input, shape index: {}]
  %s1 = inlined_call_operand.hbm [shape: f32[2,24,128], index: 1, kind: input, shape index: {}]
  %s2 = inlined_call_operand.hbm [shape: f32[2,24,128], index: 2, kind: input, shape index: {}]
  %s3 = inlined_call_operand.hbm [shape: f32[2,24,128], index: 3, kind: input, shape index: {}]
  %s4 = inlined_call_operand.hbm [shape: f32[3,2,8,128], index: 4, kind: output, shape index: {0}]
  %s5 = inlined_call_operand.hbm [shape: f32[3,2,8,128], index: 5, kind: output, shape index: {1}]
  %6 = xla_tuple %s4, %s5
  %s7 = sld [smem:[#allocation0]]
  $region77: #{tpu_custom_call.1} parent=0
    _
  %s9 = ssub.s32 1, %s7
  %s10 = scalar_select 0, %s9, %s7
  $region1: #{tpu_custom_call.1} parent=0
    #allocation2 [shape = 'u8[24576]{0}', space=vmem, size = 0x6000, scoped, tag = 'input window, operand 0']
    #allocation3 [shape = 's32[2]{0}', space=sflag, size = 0x8, scoped, tag = 'scoped memory for tpu_custom_call.1']
    #allocation4 [shape = 's32[2]{0}', space=sflag, size = 0x8, scoped, tag = 'scoped memory for tpu_custom_call.1']
    #allocation5 [shape = 'u8[24576]{0}', space=vmem, size = 0x6000, scoped, tag = 'input window, operand 1']
    #allocation6 [shape = 's32[2]{0}', space=sflag, size = 0x8, scoped, tag = 'scoped memory for tpu_custom_call.1']
    #allocation7 [shape = 'u8[24576]{0}', space=vmem, size = 0x6000, scoped, tag = 'input window, operand 2']
    #allocation8 [shape = 'u8[24576]{0}', space=vmem, size = 0x6000, scoped, tag = 'input window, operand 3']
    #allocation9 [shape = 's32[2]{0}', space=sflag, size = 0x8, scoped, tag = 'scoped memory for tpu_custom_call.1']
    #allocation10 [shape = 'u8[24576]{0}', space=vmem, size = 0x6000, scoped, tag = 'output window, operand 0']
    #allocation11 [shape = 'u8[24576]{0}', space=vmem, size = 0x6000, scoped, tag = 'output window, operand 1']
    #allocation12 [shape = 's32[2]{0}', space=sflag, size = 0x8, scoped, tag = 'scoped memory for tpu_custom_call.1']
    %11 = vsyncpa [#allocation3], 0
    %s12 = scalar_lea.sflag [#allocation3], 1
    %13 = vsyncpa %s12, 0
    %14 = vsyncpa [#allocation6], 0
    %s15 = scalar_lea.sflag [#allocation6], 1
    %16 = vsyncpa %s15, 0
    %17 = vsyncpa [#allocation9], 0
    %s18 = scalar_lea.sflag [#allocation9], 1
    %19 = vsyncpa %s18, 0
    %20 = vsyncpa [#allocation4], 0
    %s21 = scalar_lea.sflag [#allocation4], 1
    %22 = vsyncpa %s21, 0
    %23 = vsyncpa [#allocation12], 0
    %s24 = scalar_lea.sflag [#allocation12], 1
    %25 = vsyncpa %s24, 0
    loop: start=0, step=1, limit=4
    $region2: #{tpu_custom_call.1} parent=1 // loop_pre_header
      _
    $region3: #{tpu_custom_call.1} parent=1 // loop_header
      %s27 = sphi 0, %s31
      %p28 = scmp.ge.s32.totalorder %s27, 4
      %s34 = sphi 0, %s46
      %s35 = sphi 0, %s42
      %s36 = sphi 0, %s34
      %s37 = sphi 0, %s35
      %s38 = sphi 0, %s36
      %s39 = sphi 0, %s37
      %s51 = sphi 0, %s53
      %s54 = sphi 0, %s51
      %s55 = sphi 0, %s54
      %s71 = sphi 0, %s55
      %s79 = sphi 0, %s81
      %s82 = sphi 0, %s79
      %s83 = sphi 0, %s82
      %s99 = sphi 0, %s83
      %s107 = sphi 0, %s109
      %s110 = sphi 0, %s107
      %s111 = sphi 0, %s110
      %s127 = sphi 0, %s111
      %s135 = sphi 0, %s137
      %s138 = sphi 0, %s135
      %s139 = sphi 0, %s138
      %s155 = sphi 0, %s139
      %s161 = sphi 0, %s163
      %s164 = sphi 0, %s161
      %s165 = sphi 0, %s164
      %s181 = sphi 0, %s165
      %s187 = sphi 0, %s189
      %s190 = sphi 0, %s187
      %s191 = sphi 0, %s190
      %s207 = sphi 0, %s191
    $region4: #{tpu_custom_call.1} parent=1 // loop_header_branch
      %30 = sbr.rel (%p28) target = $region8
    $region5: #{tpu_custom_call.1} parent=1 // loop_body
      %s32 = ssub.s32 %s27, 1
      %s33 = ssub.s32 %s27, 2
      %s40 = sadd.s32 1, %s35
      %p41 = scmp.ge.s32.totalorder %s40, 1
      %s42 = scalar_select %p41, 0, %s40
      %s43 = sadd.s32 1, %s34
      %s44 = scalar_select %p41, %s43, %s34
      %p45 = scmp.ge.s32.totalorder %s44, 2
      %s46 = scalar_select %p45, 0, %s44
      %s47 = ssub.s32 %s34, %s46
      %s48 = ssub.s32 %s35, %s42
      %s49 = sor.u32 %s47, %s48
      %p50 = scmp.eq.s32.totalorder %s49, 0
      %s52 = sadd.s32 %s51, 1
      %s53 = scalar_select %p50, %s51, %s52
      %p56 = pneg %p50
      %p57 = scmp.eq.s32.totalorder %s27, 1
      %p58 = por %p56, %p57
      %p59 = scmp.ne.s32.totalorder %s51, %s54
      %p60 = scmp.eq.s32.totalorder %s27, 0
      %p61 = por %p59, %p60
      %p62 = scmp.ne.s32.totalorder %s51, %s54
      %p63 = scmp.eq.s32.totalorder %s32, 1
      %p64 = por %p62, %p63
      %p65 = scmp.ne.s32.totalorder %s54, %s55
      %p66 = scmp.eq.s32.totalorder %s32, 0
      %p67 = por %p65, %p66
      %p68 = scmp.ne.s32.totalorder %s54, %s55
      %p69 = scmp.eq.s32.totalorder %s33, 1
      %p70 = por %p68, %p69
      %p72 = scmp.ne.s32.totalorder %s55, %s71
      %p73 = scmp.eq.s32.totalorder %s33, 0
      %p74 = por %p72, %p73
      %s75 = ssub.s32 %s34, %s46
      %s76 = ssub.s32 %s35, %s42
      %s77 = sor.u32 %s75, %s76
      %p78 = scmp.eq.s32.totalorder %s77, 0
      %s80 = sadd.s32 %s79, 1
      %s81 = scalar_select %p78, %s79, %s80
      %p84 = pneg %p78
      %p85 = scmp.eq.s32.totalorder %s27, 1
      %p86 = por %p84, %p85
      %p87 = scmp.ne.s32.totalorder %s79, %s82
      %p88 = scmp.eq.s32.totalorder %s27, 0
      %p89 = por %p87, %p88
      %p90 = scmp.ne.s32.totalorder %s79, %s82
      %p91 = scmp.eq.s32.totalorder %s32, 1
      %p92 = por %p90, %p91
      %p93 = scmp.ne.s32.totalorder %s82, %s83
      %p94 = scmp.eq.s32.totalorder %s32, 0
      %p95 = por %p93, %p94
      %p96 = scmp.ne.s32.totalorder %s82, %s83
      %p97 = scmp.eq.s32.totalorder %s33, 1
      %p98 = por %p96, %p97
      %p100 = scmp.ne.s32.totalorder %s83, %s99
      %p101 = scmp.eq.s32.totalorder %s33, 0
      %p102 = por %p100, %p101
      %s103 = ssub.s32 %s34, %s46
      %s104 = ssub.s32 %s35, %s42
      %s105 = sor.u32 %s103, %s104
      %p106 = scmp.eq.s32.totalorder %s105, 0
      %s108 = sadd.s32 %s107, 1
      %s109 = scalar_select %p106, %s107, %s108
      %p112 = pneg %p106
      %p113 = scmp.eq.s32.totalorder %s27, 1
      %p114 = por %p112, %p113
      %p115 = scmp.ne.s32.totalorder %s107, %s110
      %p116 = scmp.eq.s32.totalorder %s27, 0
      %p117 = por %p115, %p116
      %p118 = scmp.ne.s32.totalorder %s107, %s110
      %p119 = scmp.eq.s32.totalorder %s32, 1
      %p120 = por %p118, %p119
      %p121 = scmp.ne.s32.totalorder %s110, %s111
      %p122 = scmp.eq.s32.totalorder %s32, 0
      %p123 = por %p121, %p122
      %p124 = scmp.ne.s32.totalorder %s110, %s111
      %p125 = scmp.eq.s32.totalorder %s33, 1
      %p126 = por %p124, %p125
      %p128 = scmp.ne.s32.totalorder %s111, %s127
      %p129 = scmp.eq.s32.totalorder %s33, 0
      %p130 = por %p128, %p129
      %s131 = ssub.s32 %s34, %s46
      %s132 = ssub.s32 %s35, %s42
      %s133 = sor.u32 %s131, %s132
      %p134 = scmp.eq.s32.totalorder %s133, 0
      %s136 = sadd.s32 %s135, 1
      %s137 = scalar_select %p134, %s135, %s136
      %p140 = pneg %p134
      %p141 = scmp.eq.s32.totalorder %s27, 1
      %p142 = por %p140, %p141
      %p143 = scmp.ne.s32.totalorder %s135, %s138
      %p144 = scmp.eq.s32.totalorder %s27, 0
      %p145 = por %p143, %p144
      %p146 = scmp.ne.s32.totalorder %s135, %s138
      %p147 = scmp.eq.s32.totalorder %s32, 1
      %p148 = por %p146, %p147
      %p149 = scmp.ne.s32.totalorder %s138, %s139
      %p150 = scmp.eq.s32.totalorder %s32, 0
      %p151 = por %p149, %p150
      %p152 = scmp.ne.s32.totalorder %s138, %s139
      %p153 = scmp.eq.s32.totalorder %s33, 1
      %p154 = por %p152, %p153
      %p156 = scmp.ne.s32.totalorder %s139, %s155
      %p157 = scmp.eq.s32.totalorder %s33, 0
      %p158 = por %p156, %p157
      %s159 = ssub.s32 %s34, %s46
      %p160 = scmp.eq.s32.totalorder %s159, 0
      %s162 = sadd.s32 %s161, 1
      %s163 = scalar_select %p160, %s161, %s162
      %p166 = pneg %p160
      %p167 = scmp.eq.s32.totalorder %s27, 1
      %p168 = por %p166, %p167
      %p169 = scmp.ne.s32.totalorder %s161, %s164
      %p170 = scmp.eq.s32.totalorder %s27, 0
      %p171 = por %p169, %p170
      %p172 = scmp.ne.s32.totalorder %s161, %s164
      %p173 = scmp.eq.s32.totalorder %s32, 1
      %p174 = por %p172, %p173
      %p175 = scmp.ne.s32.totalorder %s164, %s165
      %p176 = scmp.eq.s32.totalorder %s32, 0
      %p177 = por %p175, %p176
      %p178 = scmp.ne.s32.totalorder %s164, %s165
      %p179 = scmp.eq.s32.totalorder %s33, 1
      %p180 = por %p178, %p179
      %p182 = scmp.ne.s32.totalorder %s165, %s181
      %p183 = scmp.eq.s32.totalorder %s33, 0
      %p184 = por %p182, %p183
      %s185 = ssub.s32 %s34, %s46
      %p186 = scmp.eq.s32.totalorder %s185, 0
      %s188 = sadd.s32 %s187, 1
      %s189 = scalar_select %p186, %s187, %s188
      %p192 = pneg %p186
      %p193 = scmp.eq.s32.totalorder %s27, 1
      %p194 = por %p192, %p193
      %p195 = scmp.ne.s32.totalorder %s187, %s190
      %p196 = scmp.eq.s32.totalorder %s27, 0
      %p197 = por %p195, %p196
      %p198 = scmp.ne.s32.totalorder %s187, %s190
      %p199 = scmp.eq.s32.totalorder %s32, 1
      %p200 = por %p198, %p199
      %p201 = scmp.ne.s32.totalorder %s190, %s191
      %p202 = scmp.eq.s32.totalorder %s32, 0
      %p203 = por %p201, %p202
      %p204 = scmp.ne.s32.totalorder %s190, %s191
      %p205 = scmp.eq.s32.totalorder %s33, 1
      %p206 = por %p204, %p205
      %p208 = scmp.ne.s32.totalorder %s191, %s207
      %p209 = scmp.eq.s32.totalorder %s33, 0
      %p210 = por %p208, %p209
      %p211 = scmp.le.s32.totalorder 1, %s27
      %p212 = scmp.lt.s32.totalorder %s27, 3
      %p213 = pnand %p211, %p212
      %p214 = pneg %p213
      // Predicated region
      $region9: #{tpu_custom_call.1} parent=5 // pred_check
        _
      $region10: #{tpu_custom_call.1} parent=5 // pred_check_branch
        %216 = sbr.rel (%p213) target = $region12
      $region11: #{tpu_custom_call.1} parent=5 // pred_region
        %s217 = ssub.s32 %s27, 1
      $region12: #{tpu_custom_call.1} parent=5 // pred_fallthru
        _
      %p218 = scmp.lt.s32.totalorder %s27, 2
      // Predicated region
      $region13: #{tpu_custom_call.1} parent=5 // pred_check
        %p219 = pneg %p218
      $region14: #{tpu_custom_call.1} parent=5 // pred_check_branch
        %221 = sbr.rel (%p219) target = $region16
      $region15: #{tpu_custom_call.1} parent=5 // pred_region
        // Predicated region
        $region17: #{tpu_custom_call.1} parent=15 // pred_check
          %p222 = pneg %p61
        $region18: #{tpu_custom_call.1} parent=15 // pred_check_branch
          %224 = sbr.rel (%p222) target = $region20
        $region19: #{tpu_custom_call.1} parent=15 // pred_region
          %s225 = sand.u32 %s51, 1
          %s226 = scalar_lea.sflag [#allocation3], %s225
          %s227 = sand.u32 %s51, 1
          %s228 = smul.addr %s227, 24
          %s229 = scalar_lea.vmem [#allocation2], %s228
          %s230 = smul.u32 3, %s35
          %232 = vsyncadd %s226, 0
          %s233 = smul.addr %s34, 3
          %s234 = sadd.s32 %s230, %s233
          %s235 = smul.addr %s234, 8
          %s236 = scalar_lea.hbm %s0, %s235
          %s237 = sshll.u32 %s236, 4
          %s238 = int_to_ptr.hbm [resolvable:$true] %s237
          %s239 = sshll.u32 %s229, 4
          %s240 = int_to_ptr.vmem [resolvable:$true] %s239
          %245 = dma.hbm_to_vmem [thread:$0]  %s238, 384, %s240, %s226, 128, 128, 8
        $region20: #{tpu_custom_call.1} parent=15 // pred_fallthru
          _
        // Predicated region
        $region21: #{tpu_custom_call.1} parent=15 // pred_check
          %p246 = pneg %p89
        $region22: #{tpu_custom_call.1} parent=15 // pred_check_branch
          %248 = sbr.rel (%p246) target = $region24
        $region23: #{tpu_custom_call.1} parent=15 // pred_region
          %s249 = sand.u32 %s27, 1
          %s250 = scalar_lea.sflag [#allocation6], %s249
          %s251 = sand.u32 %s79, 1
          %s252 = smul.addr %s251, 24
          %s253 = scalar_lea.vmem [#allocation5], %s252
          %s254 = smul.u32 3, %s35
          %256 = vsyncadd %s250, 0
          %s257 = smul.addr %s34, 3
          %s258 = sadd.s32 %s254, %s257
          %s259 = smul.addr %s258, 8
          %s260 = scalar_lea.hbm %s1, %s259
          %s261 = sshll.u32 %s260, 4
          %s262 = int_to_ptr.hbm [resolvable:$true] %s261
          %s263 = sshll.u32 %s253, 4
          %s264 = int_to_ptr.vmem [resolvable:$true] %s263
          %269 = dma.hbm_to_vmem [thread:$0]  %s262, 384, %s264, %s250, 128, 128, 8
        $region24: #{tpu_custom_call.1} parent=15 // pred_fallthru
          _
        // Predicated region
        $region25: #{tpu_custom_call.1} parent=15 // pred_check
          %p270 = pneg %p117
        $region26: #{tpu_custom_call.1} parent=15 // pred_check_branch
          %272 = sbr.rel (%p270) target = $region28
        $region27: #{tpu_custom_call.1} parent=15 // pred_region
          %s273 = sand.u32 %s27, 1
          %s274 = scalar_lea.sflag [#allocation6], %s273
          %s275 = sand.u32 %s107, 1
          %s276 = smul.addr %s275, 24
          %s277 = scalar_lea.vmem [#allocation7], %s276
          %s278 = smul.u32 3, %s35
          %280 = vsyncadd %s274, 0
          %s281 = smul.addr %s34, 3
          %s282 = sadd.s32 %s278, %s281
          %s283 = smul.addr %s282, 8
          %s284 = scalar_lea.hbm %s2, %s283
          %s285 = sshll.u32 %s284, 4
          %s286 = int_to_ptr.hbm [resolvable:$true] %s285
          %s287 = sshll.u32 %s277, 4
          %s288 = int_to_ptr.vmem [resolvable:$true] %s287
          %293 = dma.hbm_to_vmem [thread:$0]  %s286, 384, %s288, %s274, 128, 128, 8
        $region28: #{tpu_custom_call.1} parent=15 // pred_fallthru
          _
        // Predicated region
        $region29: #{tpu_custom_call.1} parent=15 // pred_check
          %p294 = pneg %p145
        $region30: #{tpu_custom_call.1} parent=15 // pred_check_branch
          %296 = sbr.rel (%p294) target = $region32
        $region31: #{tpu_custom_call.1} parent=15 // pred_region
          %s297 = sand.u32 %s135, 1
          %s298 = scalar_lea.sflag [#allocation9], %s297
          %s299 = sand.u32 %s135, 1
          %s300 = smul.addr %s299, 24
          %s301 = scalar_lea.vmem [#allocation8], %s300
          %s302 = smul.u32 3, %s35
          %304 = vsyncadd %s298, 0
          %s305 = smul.addr %s34, 3
          %s306 = sadd.s32 %s302, %s305
          %s307 = smul.addr %s306, 8
          %s308 = scalar_lea.hbm %s3, %s307
          %s309 = sshll.u32 %s308, 4
          %s310 = int_to_ptr.hbm [resolvable:$true] %s309
          %s311 = sshll.u32 %s301, 4
          %s312 = int_to_ptr.vmem [resolvable:$true] %s311
          %317 = dma.hbm_to_vmem [thread:$0]  %s310, 384, %s312, %s298, 128, 128, 8
        $region32: #{tpu_custom_call.1} parent=15 // pred_fallthru
          _
      $region16: #{tpu_custom_call.1} parent=5 // pred_fallthru
        _
      %p318 = scmp.le.s32.totalorder 1, %s27
      %p319 = scmp.lt.s32.totalorder %s27, 3
      %p320 = pnand %p318, %p319
      %p321 = pneg %p320
      // Predicated region
      $region33: #{tpu_custom_call.1} parent=5 // pred_check
        _
      $region34: #{tpu_custom_call.1} parent=5 // pred_check_branch
        %323 = sbr.rel (%p320) target = $region36
      $region35: #{tpu_custom_call.1} parent=5 // pred_region
        %s324 = ssub.s32 %s27, 1
        %s325 = sand.u32 %s54, 1
        %s326 = scalar_lea.sflag [#allocation3], %s325
        %s327 = sand.u32 %s54, 1
        %s328 = smul.addr %s327, 24
        %s329 = scalar_lea.vmem [#allocation2], %s328
        // Predicated region
        $region37: #{tpu_custom_call.1} parent=35 // pred_check
          %p330 = pneg %p67
        $region38: #{tpu_custom_call.1} parent=35 // pred_check_branch
          %332 = sbr.rel (%p330) target = $region40
        $region39: #{tpu_custom_call.1} parent=35 // pred_region
          %334 = dma.done %s326, 384
        $region40: #{tpu_custom_call.1} parent=35 // pred_fallthru
          _
        %s335 = sand.u32 %s32, 1
        %s336 = scalar_lea.sflag [#allocation6], %s335
        %s337 = sand.u32 %s82, 1
        %s338 = smul.addr %s337, 24
        %s339 = scalar_lea.vmem [#allocation5], %s338
        // Predicated region
        $region41: #{tpu_custom_call.1} parent=35 // pred_check
          %p340 = pneg %p95
        $region42: #{tpu_custom_call.1} parent=35 // pred_check_branch
          %342 = sbr.rel (%p340) target = $region44
        $region43: #{tpu_custom_call.1} parent=35 // pred_region
          %344 = dma.done %s336, 384
        $region44: #{tpu_custom_call.1} parent=35 // pred_fallthru
          _
        %s345 = sand.u32 %s32, 1
        %s346 = scalar_lea.sflag [#allocation6], %s345
        %s347 = sand.u32 %s110, 1
        %s348 = smul.addr %s347, 24
        %s349 = scalar_lea.vmem [#allocation7], %s348
        // Predicated region
        $region45: #{tpu_custom_call.1} parent=35 // pred_check
          %p350 = pneg %p123
        $region46: #{tpu_custom_call.1} parent=35 // pred_check_branch
          %352 = sbr.rel (%p350) target = $region48
        $region47: #{tpu_custom_call.1} parent=35 // pred_region
          %354 = dma.done %s346, 384
        $region48: #{tpu_custom_call.1} parent=35 // pred_fallthru
          _
        %s355 = sand.u32 %s138, 1
        %s356 = scalar_lea.sflag [#allocation9], %s355
        %s357 = sand.u32 %s138, 1
        %s358 = smul.addr %s357, 24
        %s359 = scalar_lea.vmem [#allocation8], %s358
        // Predicated region
        $region49: #{tpu_custom_call.1} parent=35 // pred_check
          %p360 = pneg %p151
        $region50: #{tpu_custom_call.1} parent=35 // pred_check_branch
          %362 = sbr.rel (%p360) target = $region52
        $region51: #{tpu_custom_call.1} parent=35 // pred_region
          %364 = dma.done %s356, 384
        $region52: #{tpu_custom_call.1} parent=35 // pred_fallthru
          _
        %s365 = sand.u32 %s54, 1
        %s366 = scalar_lea.sflag [#allocation3], %s365
        %s367 = sand.u32 %s54, 1
        %s368 = smul.addr %s367, 24
        %s369 = scalar_lea.vmem [#allocation2], %s368
        %p370 = pneg %p67
        %p371 = pneg %p64
        %s372 = sand.u32 %s32, 1
        %s373 = scalar_lea.sflag [#allocation6], %s372
        %s374 = sand.u32 %s82, 1
        %s375 = smul.addr %s374, 24
        %s376 = scalar_lea.vmem [#allocation5], %s375
        %p377 = pneg %p95
        %p378 = pneg %p92
        %s379 = sand.u32 %s32, 1
        %s380 = scalar_lea.sflag [#allocation6], %s379
        %s381 = sand.u32 %s110, 1
        %s382 = smul.addr %s381, 24
        %s383 = scalar_lea.vmem [#allocation7], %s382
        %p384 = pneg %p123
        %p385 = pneg %p120
        %s386 = sand.u32 %s138, 1
        %s387 = scalar_lea.sflag [#allocation9], %s386
        %s388 = sand.u32 %s138, 1
        %s389 = smul.addr %s388, 24
        %s390 = scalar_lea.vmem [#allocation8], %s389
        %p391 = pneg %p151
        %p392 = pneg %p148
        %p393 = pneg %p177
        %p394 = pneg %p174
        %s395 = sand.u32 %s164, 1
        %s396 = scalar_lea.sflag [#allocation4], %s395
        %s397 = sand.u32 %s164, 1
        %s398 = smul.addr %s397, 24
        %s399 = scalar_lea.vmem [#allocation10], %s398
        %p400 = pneg %p203
        %p401 = pneg %p200
        %s402 = sand.u32 %s190, 1
        %s403 = scalar_lea.sflag [#allocation12], %s402
        %s404 = sand.u32 %s190, 1
        %s405 = smul.addr %s404, 24
        %s406 = scalar_lea.vmem [#allocation11], %s405
        %s407 = smul.u32 3, %s37
        %s408 = smul.u32 3, %s37
        %s409 = smul.u32 3, %s37
        %s410 = smul.u32 3, %s37
        %p411 = scmp.eq.s32.totalorder %s37, 0
        // Predicated region
        $region53: #{tpu_custom_call.1} parent=35 // pred_check
          %p412 = pneg %p411
        $region54: #{tpu_custom_call.1} parent=35 // pred_check_branch
          %414 = sbr.rel (%p412) target = $region56
        $region55: #{tpu_custom_call.1} parent=35 // pred_region
          %415 = vst [vmem:[%s399] sm:$0xff] 0.0
          %416 = vst [vmem:[%s399 + $0x8] sm:$0xff] 0.0
          %417 = vst [vmem:[%s399 + $0x10] sm:$0xff] 0.0
          %418 = vst [vmem:[%s406] sm:$0xff] 0.0
          %419 = vst [vmem:[%s406 + $0x8] sm:$0xff] 0.0
          %420 = vst [vmem:[%s406 + $0x10] sm:$0xff] 0.0
        $region56: #{tpu_custom_call.1} parent=35 // pred_fallthru
          _
        %v421 = vld [vmem:[%s359] sm:$0xff]
        %v422 = vld [vmem:[%s359 + $0x8] sm:$0xff]
        %v423 = vld [vmem:[%s359 + $0x10] sm:$0xff]
        %v424 = vld [vmem:[%s329] sm:$0xff]
        %v425 = vld [vmem:[%s329 + $0x8] sm:$0xff]
        %v426 = vld [vmem:[%s329 + $0x10] sm:$0xff]
        %v427 = vsub.f32 %v424, %v421
        %v428 = vsub.f32 %v425, %v422
        %v429 = vsub.f32 %v426, %v423
        %v430 = vld [vmem:[%s399] sm:$0xff]
        %v431 = vand.u32 2147483647, %v427
        %v432 = vand.u32 2147483647, %v428
        %v433 = vand.u32 2147483647, %v429
        %v434 = vadd.f32 %v431, %v432
        %v435 = vadd.f32 %v434, %v433
        %v436 = vadd.f32 %v430, %v435
        %437 = vst [vmem:[%s399] sm:$0xff] %v436
        %v438 = vld [vmem:[%s406] sm:$0xff]
        %v439 = vmul.f32 %v427, %v427
        %v440 = vmul.f32 %v428, %v428
        %v441 = vmul.f32 %v429, %v429
        %v442 = vadd.f32 %v439, %v440
        %v443 = vadd.f32 %v442, %v441
        %v444 = vadd.f32 %v438, %v443
        %445 = vst [vmem:[%s406] sm:$0xff] %v444
        %v446 = vld [vmem:[%s339] sm:$0xff]
        %v447 = vld [vmem:[%s339 + $0x8] sm:$0xff]
        %v448 = vld [vmem:[%s339 + $0x10] sm:$0xff]
        %v449 = vsub.f32 %v446, %v421
        %v450 = vsub.f32 %v447, %v422
        %v451 = vsub.f32 %v448, %v423
        %s452 = scalar_lea.vmem %s399, 8 [#allocation10]
        %v453 = vld [vmem:[%s452] sm:$0xff]
        %v454 = vand.u32 2147483647, %v449
        %v455 = vand.u32 2147483647, %v450
        %v456 = vand.u32 2147483647, %v451
        %v457 = vadd.f32 %v454, %v455
        %v458 = vadd.f32 %v457, %v456
        %v459 = vadd.f32 %v453, %v458
        %460 = vst [vmem:[%s452] sm:$0xff] %v459
        %s461 = scalar_lea.vmem %s406, 8 [#allocation11]
        %v462 = vld [vmem:[%s461] sm:$0xff]
        %v463 = vmul.f32 %v449, %v449
        %v464 = vmul.f32 %v450, %v450
        %v465 = vmul.f32 %v451, %v451
        %v466 = vadd.f32 %v463, %v464
        %v467 = vadd.f32 %v466, %v465
        %v468 = vadd.f32 %v462, %v467
        %469 = vst [vmem:[%s461] sm:$0xff] %v468
        %v470 = vld [vmem:[%s349] sm:$0xff]
        %v471 = vld [vmem:[%s349 + $0x8] sm:$0xff]
        %v472 = vld [vmem:[%s349 + $0x10] sm:$0xff]
        %v473 = vsub.f32 %v470, %v421
        %v474 = vsub.f32 %v471, %v422
        %v475 = vsub.f32 %v472, %v423
        %s476 = scalar_lea.vmem %s399, 16 [#allocation10]
        %v477 = vld [vmem:[%s476] sm:$0xff]
        %v478 = vand.u32 2147483647, %v473
        %v479 = vand.u32 2147483647, %v474
        %v480 = vand.u32 2147483647, %v475
        %v481 = vadd.f32 %v478, %v479
        %v482 = vadd.f32 %v481, %v480
        %v483 = vadd.f32 %v477, %v482
        %484 = vst [vmem:[%s476] sm:$0xff] %v483
        %s485 = scalar_lea.vmem %s406, 16 [#allocation11]
        %v486 = vld [vmem:[%s485] sm:$0xff]
        %v487 = vmul.f32 %v473, %v473
        %v488 = vmul.f32 %v474, %v474
        %v489 = vmul.f32 %v475, %v475
        %v490 = vadd.f32 %v487, %v488
        %v491 = vadd.f32 %v490, %v489
        %v492 = vadd.f32 %v486, %v491
        %493 = vst [vmem:[%s485] sm:$0xff] %v492
        %s494 = sand.u32 %s164, 1
        %s495 = scalar_lea.sflag [#allocation4], %s494
        %s496 = sand.u32 %s164, 1
        %s497 = smul.addr %s496, 24
        %s498 = scalar_lea.vmem [#allocation10], %s497
        %s499 = sand.u32 %s190, 1
        %s500 = scalar_lea.sflag [#allocation12], %s499
        %s501 = sand.u32 %s190, 1
        %s502 = smul.addr %s501, 24
        %s503 = scalar_lea.vmem [#allocation11], %s502
        // Predicated region
        $region57: #{tpu_custom_call.1} parent=35 // pred_check
          %p504 = pneg %p174
        $region58: #{tpu_custom_call.1} parent=35 // pred_check_branch
          %506 = sbr.rel (%p504) target = $region60
        $region59: #{tpu_custom_call.1} parent=35 // pred_region
          %508 = vsyncadd %s495, 0
          %s509 = smul.addr %s36, 8
          %s510 = scalar_lea.hbm %s4, %s509
          %s511 = sshll.u32 %s498, 4
          %s512 = int_to_ptr.vmem [resolvable:$true] %s511
          %s513 = sshll.u32 %s510, 4
          %s514 = int_to_ptr.hbm [resolvable:$true] %s513
          %519 = dma.vmem_to_hbm [thread:$0]  %s512, 384, %s514, %s495, 128, 256, 8
        $region60: #{tpu_custom_call.1} parent=35 // pred_fallthru
          _
        // Predicated region
        $region61: #{tpu_custom_call.1} parent=35 // pred_check
          %p520 = pneg %p200
        $region62: #{tpu_custom_call.1} parent=35 // pred_check_branch
          %522 = sbr.rel (%p520) target = $region64
        $region63: #{tpu_custom_call.1} parent=35 // pred_region
          %524 = vsyncadd %s500, 0
          %s525 = smul.addr %s36, 8
          %s526 = scalar_lea.hbm %s5, %s525
          %s527 = sshll.u32 %s503, 4
          %s528 = int_to_ptr.vmem [resolvable:$true] %s527
          %s529 = sshll.u32 %s526, 4
          %s530 = int_to_ptr.hbm [resolvable:$true] %s529
          %535 = dma.vmem_to_hbm [thread:$0]  %s528, 384, %s530, %s500, 128, 256, 8
        $region64: #{tpu_custom_call.1} parent=35 // pred_fallthru
          _
      $region36: #{tpu_custom_call.1} parent=5 // pred_fallthru
        _
      %p536 = scmp.le.s32.totalorder 2, %s27
      // Predicated region
      $region65: #{tpu_custom_call.1} parent=5 // pred_check
        %p537 = pneg %p536
      $region66: #{tpu_custom_call.1} parent=5 // pred_check_branch
        %539 = sbr.rel (%p537) target = $region68
      $region67: #{tpu_custom_call.1} parent=5 // pred_region
        %s540 = ssub.s32 %s27, 2
        // Predicated region
        $region69: #{tpu_custom_call.1} parent=67 // pred_check
          %p541 = pneg %p180
        $region70: #{tpu_custom_call.1} parent=67 // pred_check_branch
          %543 = sbr.rel (%p541) target = $region72
        $region71: #{tpu_custom_call.1} parent=67 // pred_region
          %s544 = sand.u32 %s165, 1
          %s545 = scalar_lea.sflag [#allocation4], %s544
          %s546 = sand.u32 %s165, 1
          %s547 = smul.addr %s546, 24
          %s548 = scalar_lea.vmem [#allocation10], %s547
          %550 = dma.done %s545, 384
        $region72: #{tpu_custom_call.1} parent=67 // pred_fallthru
          _
        // Predicated region
        $region73: #{tpu_custom_call.1} parent=67 // pred_check
          %p551 = pneg %p206
        $region74: #{tpu_custom_call.1} parent=67 // pred_check_branch
          %553 = sbr.rel (%p551) target = $region76
        $region75: #{tpu_custom_call.1} parent=67 // pred_region
          %s554 = sand.u32 %s191, 1
          %s555 = scalar_lea.sflag [#allocation12], %s554
          %s556 = sand.u32 %s191, 1
          %s557 = smul.addr %s556, 24
          %s558 = scalar_lea.vmem [#allocation11], %s557
          %560 = dma.done %s555, 384
        $region76: #{tpu_custom_call.1} parent=67 // pred_fallthru
          _
      $region68: #{tpu_custom_call.1} parent=5 // pred_fallthru
        _
    $region6: #{tpu_custom_call.1} parent=1 // loop_footer
      %s31 = sadd.s32 1, %s27
    $region7: #{tpu_custom_call.1} parent=1 // loop_footer_branch
      %26 = sbr.rel target = $region3
    $region8: #{tpu_custom_call.1} parent=1 // loop_exit
      _
    %561 = vsyncpa [#allocation3], 1
    %s562 = scalar_lea.sflag [#allocation3], 1
    %563 = vsyncpa %s562, 1
    %564 = vsyncpa [#allocation6], 1
    %s565 = scalar_lea.sflag [#allocation6], 1
    %566 = vsyncpa %s565, 1
    %567 = vsyncpa [#allocation9], 1
    %s568 = scalar_lea.sflag [#allocation9], 1
    %569 = vsyncpa %s568, 1
    %570 = vsyncpa [#allocation4], 1
    %s571 = scalar_lea.sflag [#allocation4], 1
    %572 = vsyncpa %s571, 1
    %573 = vsyncpa [#allocation12], 1
    %s574 = scalar_lea.sflag [#allocation12], 1
    %575 = vsyncpa %s574, 1

</llo_original>
